<compile_context>
chip_gen: v5e
topology: v5e:2x2
jax: 0.10.0
libtpu: 0.0.40
codegen_flags: <defaults>
</compile_context>

<pallas_src>
import jax
import jax.numpy as jnp
from jax.experimental import pallas as pl
from jax.experimental.pallas import tpu as pltpu

H1_PAD = 128   # 42 -> 128 features (zero-padded; bit-identical through ReLU)
H2_PAD = 128   # 35 -> 128 features


def _round_up(n, m):
    return ((n + m - 1) // m) * m


# ------------------------- Pallas kernel -------------------------

def mlp_kernel(x_ref, w1t_ref, b1_ref, w2t_ref, b2_ref, w3_ref, b3_ref, o_ref):
    # x tile arrives as f32 straight from HBM; cast to bf16 after the VMEM load
    # and transpose ONCE while it is still narrow (TM, D) -> (D, TM).
    x_t = jnp.transpose(x_ref[...].astype(jnp.bfloat16))              # (D, TM) bf16

    # Layer 1 (batch on lanes): (128, D) @ (D, TM) -> (128, TM), f32 accumulate.
    h1 = jnp.dot(w1t_ref[...], x_t,
                 preferred_element_type=jnp.float32) + b1_ref[...]
    h1 = jnp.maximum(h1, 0.0)                                          # (128, TM) f32

    # Layer 2: (128, 128) @ (128, TM) -> (128, TM).
    h2 = jnp.dot(w2t_ref[...], h1.astype(jnp.bfloat16),
                 preferred_element_type=jnp.float32) + b2_ref[...]
    h2 = jnp.maximum(h2, 0.0)                                          # (128, TM) f32

    # Dropout(p=0.4896): identity at inference time.
    # TODO(synk): training-mode dropout (PRNG mask + 1/(1-p) scale) not implemented.

    # Layer 3 (out_features = 1): (1, 128) @ (128, TM) -> lane-dense (1, TM) row.
    row = jnp.dot(w3_ref[...], h2.astype(jnp.bfloat16),
                  preferred_element_type=jnp.float32) + b3_ref[...]    # (1, TM) f32

    o_ref[...] = row.astype(o_ref.dtype)                               # unmasked vst


def binary_classification_forward(x, params, *, tile_m=1024):
    """x: (batch, input_dim) f32 -> (batch, 1) f32 logits."""
    w1t, b1, w2t, b2, w3, b3 = params
    batch, input_dim = x.shape

    # tile_m is a sweep parameter.  Keep it a multiple of 128 (lane-dense output
    # block), clamp to the 128-rounded batch, and when the batch is large enough
    # keep >= 4 grid steps so the v7x megacore gets >= 2 steps per TensorCore.
    tile_m = _round_up(max(tile_m, 128), 128)
    tile_m = min(tile_m, _round_up(batch, 128))
    if batch >= 4 * 128 and tile_m * 4 > batch:
        tile_m = _round_up(pl.cdiv(batch, 4), 128)

    num_tiles = pl.cdiv(batch, tile_m)
    padded = num_tiles * tile_m          # output padding only; x is NOT copied/padded

    flops = 2 * padded * (input_dim * H1_PAD + H1_PAD * H2_PAD + H2_PAD)
    bytes_accessed = (padded * input_dim * 4                               # f32 x stream
                      + sum(int(p.size) * int(p.dtype.itemsize)
                            for p in (w1t, b1, w2t, b2, w3, b3))           # weights
                      + padded * 4)                                        # logits row

    out = pl.pallas_call(
        mlp_kernel,
        out_shape=jax.ShapeDtypeStruct((1, padded), jnp.float32),
        grid_spec=pltpu.PrefetchScalarGridSpec(
            num_scalar_prefetch=0,
            grid=(num_tiles,),
            in_specs=[
                # x: only streamed input; last (ragged) block relies on Pallas
                # partial-block semantics (garbage rows are lane-independent).
                pl.BlockSpec((tile_m, input_dim), lambda i: (i, 0)),
                # Constant block indices -> weights/biases stay VMEM-resident.
                pl.BlockSpec((H1_PAD, input_dim), lambda i: (0, 0)),   # W1^T (bf16)
                pl.BlockSpec((H1_PAD, 1), lambda i: (0, 0)),           # b1   (f32)
                pl.BlockSpec((H2_PAD, H1_PAD), lambda i: (0, 0)),      # W2^T (bf16)
                pl.BlockSpec((H2_PAD, 1), lambda i: (0, 0)),           # b2   (f32)
                pl.BlockSpec((1, H2_PAD), lambda i: (0, 0)),           # w3 row (bf16)
                pl.BlockSpec((1, 1), lambda i: (0, 0)),                # b3   (f32)
            ],
            # Lane-dense output: one (1, tile_m) row of logits per grid step.
            out_specs=pl.BlockSpec((1, tile_m), lambda i: (0, i)),
        ),
        compiler_params=pltpu.CompilerParams(
            dimension_semantics=("parallel",)),      # shards grid across TCs (v7x)
        cost_estimate=pl.CostEstimate(
            flops=flops, transcendentals=0, bytes_accessed=bytes_accessed),
    )(x, w1t, b1, w2t, b2, w3, b3)

    return out.reshape(padded)[:batch].reshape(batch, 1)


# ------------------------- parameter init (deterministic) -------------------------

def init_params(key, input_dim):
    """PyTorch-style Linear init; weights stored pre-transposed (batch-on-lanes
    layout), zero-padded to 128 features, bf16 matrices + f32 (128,1) biases."""
    def linear(k, fan_in, fan_out):
        kw, kb = jax.random.split(k)
        bound = 1.0 / jnp.sqrt(jnp.float32(fan_in))
        w = jax.random.uniform(kw, (fan_in, fan_out), jnp.float32, -bound, bound)
        b = jax.random.uniform(kb, (fan_out,), jnp.float32, -bound, bound)
        return w, b

    k1, k2, k3 = jax.random.split(key, 3)
    w1, b1 = linear(k1, input_dim, 42)
    w2, b2 = linear(k2, 42, 35)
    w3, b3 = linear(k3, 35, 1)

    w1t = jnp.zeros((H1_PAD, input_dim), jnp.float32).at[:42, :].set(w1.T)
    b1p = jnp.zeros((H1_PAD, 1), jnp.float32).at[:42, 0].set(b1)
    w2t = jnp.zeros((H2_PAD, H1_PAD), jnp.float32).at[:35, :42].set(w2.T)
    b2p = jnp.zeros((H2_PAD, 1), jnp.float32).at[:35, 0].set(b2)
    w3r = jnp.zeros((1, H2_PAD), jnp.float32).at[0, :35].set(w3[:, 0])
    b3p = b3.reshape(1, 1)

    return (w1t.astype(jnp.bfloat16), b1p,
            w2t.astype(jnp.bfloat16), b2p,
            w3r.astype(jnp.bfloat16), b3p)


# ------------------------- reference (pure JAX, mirrors kernel numerics) -------------------------

def reference_forward(x, params):
    w1t, b1, w2t, b2, w3, b3 = params
    xb = x.astype(jnp.bfloat16).astype(jnp.float32)                     # (B, D)
    h1 = jnp.maximum(w1t.astype(jnp.float32) @ xb.T + b1, 0.0)          # (128, B)
    h1b = h1.astype(jnp.bfloat16).astype(jnp.float32)
    h2 = jnp.maximum(w2t.astype(jnp.float32) @ h1b + b2, 0.0)           # (128, B)
    h2b = h2.astype(jnp.bfloat16).astype(jnp.float32)
    row = w3.astype(jnp.float32) @ h2b + b3                             # (1, B)
    return row.T                                                        # (B, 1)


if __name__ == "__main__":
    key = jax.random.PRNGKey(0)
    k_x, k_p = jax.random.split(key)

    batch, input_dim = 1000, 32      # heuristic -> tile_m=256, 4 tiles, ragged tail
    x = jax.random.normal(k_x, (batch, input_dim), jnp.float32)
    params = init_params(k_p, input_dim)

    out = binary_classification_forward(x, params)
    out = jax.block_until_ready(out)

    ref = reference_forward(x, params)
    assert out.shape == (batch, 1)
    max_err = float(jnp.max(jnp.abs(out - ref)))
    assert jnp.allclose(out, ref, atol=2e-3, rtol=2e-3), \
        f"mismatch vs reference (max abs err {max_err})"

    print("KERNEL_OK")
</pallas_src>

<mosaic_0001>
module attributes {stable_mosaic.version = 11 : i64} {
  func.func @mlp_kernel(%arg0: i32, %arg1: memref<256x32xf32, #tpu.memory_space<vmem>>, %arg2: memref<128x32xbf16, #tpu.memory_space<vmem>>, %arg3: memref<128x1xf32, #tpu.memory_space<vmem>>, %arg4: memref<128x128xbf16, #tpu.memory_space<vmem>>, %arg5: memref<128x1xf32, #tpu.memory_space<vmem>>, %arg6: memref<1x128xbf16, #tpu.memory_space<vmem>>, %arg7: memref<1x1xf32, #tpu.memory_space<vmem>>, %arg8: memref<1x256xf32, #tpu.memory_space<vmem>>) attributes {dimension_semantics = [#tpu.dimension_semantics<parallel>], iteration_bounds = array<i64: 4>, scalar_prefetch = 0 : i64, scratch_operands = 0 : i64, tpu.core_type = #tpu.core_type<tc>, window_params = [{transform_indices = @transform_0, window_bounds = array<i64: 256, 32>}, {pipeline_mode = #tpu.pipeline_mode<synchronous>, transform_indices = @transform_1, window_bounds = array<i64: 128, 32>}, {pipeline_mode = #tpu.pipeline_mode<synchronous>, transform_indices = @transform_2, window_bounds = array<i64: 128, 1>}, {pipeline_mode = #tpu.pipeline_mode<synchronous>, transform_indices = @transform_3, window_bounds = array<i64: 128, 128>}, {pipeline_mode = #tpu.pipeline_mode<synchronous>, transform_indices = @transform_4, window_bounds = array<i64: 128, 1>}, {pipeline_mode = #tpu.pipeline_mode<synchronous>, transform_indices = @transform_5, window_bounds = array<i64: 1, 128>}, {pipeline_mode = #tpu.pipeline_mode<synchronous>, transform_indices = @transform_6, window_bounds = array<i64: 1, 1>}, {transform_indices = @transform_7, window_bounds = array<i64: 1, 256>}]} {
    %c0 = arith.constant 0 : index
    %c0_0 = arith.constant 0 : index
    %0 = vector.load %arg1[%c0, %c0_0] : memref<256x32xf32, #tpu.memory_space<vmem>>, vector<256x32xf32>
    %1 = arith.truncf %0 : vector<256x32xf32> to vector<256x32xbf16>
    %2 = tpu.transpose %1, [1, 0] : vector<256x32xbf16> -> vector<32x256xbf16>
    %c0_1 = arith.constant 0 : index
    %c0_2 = arith.constant 0 : index
    %3 = vector.load %arg2[%c0_1, %c0_2] : memref<128x32xbf16, #tpu.memory_space<vmem>>, vector<128x32xbf16>
    %cst = arith.constant dense<0.000000e+00> : vector<128x256xf32>
    %4 = tpu.matmul %3, %2, %cst {dimension_numbers = #tpu.dot_dimension_numbers<[1], [0], [0], [1], [0, 0, 1, 1], [], []>} : vector<128x32xbf16>, vector<32x256xbf16>, vector<128x256xf32> -> vector<128x256xf32>
    %c0_3 = arith.constant 0 : index
    %c0_4 = arith.constant 0 : index
    %5 = vector.load %arg3[%c0_3, %c0_4] : memref<128x1xf32, #tpu.memory_space<vmem>>, vector<128x1xf32>
    %6 = vector.broadcast %5 : vector<128x1xf32> to vector<128x256xf32>
    %7 = arith.addf %4, %6 : vector<128x256xf32>
    %cst_5 = arith.constant 0.000000e+00 : f32
    %8 = vector.broadcast %cst_5 : f32 to vector<128x256xf32>
    %9 = arith.maximumf %7, %8 : vector<128x256xf32>
    %c0_6 = arith.constant 0 : index
    %c0_7 = arith.constant 0 : index
    %10 = vector.load %arg4[%c0_6, %c0_7] : memref<128x128xbf16, #tpu.memory_space<vmem>>, vector<128x128xbf16>
    %11 = arith.truncf %9 : vector<128x256xf32> to vector<128x256xbf16>
    %cst_8 = arith.constant dense<0.000000e+00> : vector<128x256xf32>
    %12 = tpu.matmul %10, %11, %cst_8 {dimension_numbers = #tpu.dot_dimension_numbers<[1], [0], [0], [1], [0, 0, 1, 1], [], []>} : vector<128x128xbf16>, vector<128x256xbf16>, vector<128x256xf32> -> vector<128x256xf32>
    %c0_9 = arith.constant 0 : index
    %c0_10 = arith.constant 0 : index
    %13 = vector.load %arg5[%c0_9, %c0_10] : memref<128x1xf32, #tpu.memory_space<vmem>>, vector<128x1xf32>
    %14 = vector.broadcast %13 : vector<128x1xf32> to vector<128x256xf32>
    %15 = arith.addf %12, %14 : vector<128x256xf32>
    %cst_11 = arith.constant 0.000000e+00 : f32
    %16 = vector.broadcast %cst_11 : f32 to vector<128x256xf32>
    %17 = arith.maximumf %15, %16 : vector<128x256xf32>
    %c0_12 = arith.constant 0 : index
    %c0_13 = arith.constant 0 : index
    %18 = vector.load %arg6[%c0_12, %c0_13] : memref<1x128xbf16, #tpu.memory_space<vmem>>, vector<1x128xbf16>
    %19 = arith.truncf %17 : vector<128x256xf32> to vector<128x256xbf16>
    %cst_14 = arith.constant dense<0.000000e+00> : vector<1x256xf32>
    %20 = tpu.matmul %18, %19, %cst_14 {dimension_numbers = #tpu.dot_dimension_numbers<[1], [0], [0], [1], [0, 0, 1, 1], [], []>} : vector<1x128xbf16>, vector<128x256xbf16>, vector<1x256xf32> -> vector<1x256xf32>
    %c0_15 = arith.constant 0 : index
    %c0_16 = arith.constant 0 : index
    %21 = vector.load %arg7[%c0_15, %c0_16] : memref<1x1xf32, #tpu.memory_space<vmem>>, vector<1x1xf32>
    %22 = vector.broadcast %21 : vector<1x1xf32> to vector<1x256xf32>
    %23 = arith.addf %20, %22 : vector<1x256xf32>
    %c0_17 = arith.constant 0 : index
    %c0_18 = arith.constant 0 : index
    %24 = vector.load %arg8[%c0_17, %c0_18] : memref<1x256xf32, #tpu.memory_space<vmem>>, vector<1x256xf32>
    tpu.vector_store %arg8[%c0_17, %c0_18], %23 {strides = array<i32>} : memref<1x256xf32, #tpu.memory_space<vmem>>, vector<1x256xf32>,
    return
  }
  func.func @transform_0(%arg0: i32) -> (i32, i32) {
    %c0_i32 = arith.constant 0 : i32
    %c0_i32_0 = arith.constant 0 : i32
    return %arg0, %c0_i32 : i32, i32
  }
  func.func @transform_1(%arg0: i32) -> (i32, i32) {
    %c0_i32 = arith.constant 0 : i32
    %c0_i32_0 = arith.constant 0 : i32
    %c0_i32_1 = arith.constant 0 : i32
    return %c0_i32, %c0_i32_0 : i32, i32
  }
  func.func @transform_2(%arg0: i32) -> (i32, i32) {
    %c0_i32 = arith.constant 0 : i32
    %c0_i32_0 = arith.constant 0 : i32
    %c0_i32_1 = arith.constant 0 : i32
    return %c0_i32, %c0_i32_0 : i32, i32
  }
  func.func @transform_3(%arg0: i32) -> (i32, i32) {
    %c0_i32 = arith.constant 0 : i32
    %c0_i32_0 = arith.constant 0 : i32
    %c0_i32_1 = arith.constant 0 : i32
    return %c0_i32, %c0_i32_0 : i32, i32
  }
  func.func @transform_4(%arg0: i32) -> (i32, i32) {
    %c0_i32 = arith.constant 0 : i32
    %c0_i32_0 = arith.constant 0 : i32
    %c0_i32_1 = arith.constant 0 : i32
    return %c0_i32, %c0_i32_0 : i32, i32
  }
  func.func @transform_5(%arg0: i32) -> (i32, i32) {
    %c0_i32 = arith.constant 0 : i32
    %c0_i32_0 = arith.constant 0 : i32
    %c0_i32_1 = arith.constant 0 : i32
    return %c0_i32, %c0_i32_0 : i32, i32
  }
  func.func @transform_6(%arg0: i32) -> (i32, i32) {
    %c0_i32 = arith.constant 0 : i32
    %c0_i32_0 = arith.constant 0 : i32
    %c0_i32_1 = arith.constant 0 : i32
    return %c0_i32, %c0_i32_0 : i32, i32
  }
  func.func @transform_7(%arg0: i32) -> (i32, i32) {
    %c0_i32 = arith.constant 0 : i32
    %c0_i32_0 = arith.constant 0 : i32
    return %c0_i32, %arg0 : i32, i32
  }
}

</mosaic_0001>

<llo_original>
// kernel: tpu_custom_call.1
$region0: #{tpu_custom_call.1}
  #allocation0 [shape = 'u32[]', space=smem, size = 0x4, offset = 0x4, fixed_abs, tag = 'smem constant byte address 0x4 - core index']
  #allocation1 [shape = 'u32[72,128]{1,0:T(1,128)}', space=vmem, size = 0x9000, scoped, tag = 'internal scratch']
  #allocation2 [shape = 'f32[1,1]{1,0:T(1,128)S(1)}', space=vmem, size = 0x200, scoped, tag = 'scoped memory for tpu_custom_call.1']
  %s0 = inlined_call_operand.vmem [shape: f32[1000,32], index: 0, kind: input, shape index: {}]
  %s1 = inlined_call_operand.vmem [shape: bf16[128,32], index: 1, kind: input, shape index: {}]
  %s2 = inlined_call_operand.vmem [shape: f32[128,1], index: 2, kind: input, shape index: {}]
  %s3 = inlined_call_operand.vmem [shape: bf16[128,128], index: 3, kind: input, shape index: {}]
  %s4 = inlined_call_operand.vmem [shape: f32[128,1], index: 4, kind: input, shape index: {}]
  %s5 = inlined_call_operand.vmem [shape: bf16[1,128], index: 5, kind: input, shape index: {}]
  %s6 = inlined_call_operand.<no memory space> [shape: f32[1,1], index: 6, kind: input, shape index: {}]
  %s7 = inlined_call_operand.hbm [shape: f32[1,1024], index: 7, kind: output, shape index: {}]
  %s8 = sld [smem:[#allocation0]]
  $region61: #{tpu_custom_call.1} parent=0
    _
  %s10 = ssub.s32 1, %s8
  %s11 = scalar_select 0, %s10, %s8
  %v12 = vstv %s6
  %13 = vst [vmem:[#allocation2] sm:$0x1] %v12
  $region1: #{tpu_custom_call.1} parent=0
    #allocation3 [shape = 'u8[2048]{0}', space=vmem, size = 0x800, scoped, tag = 'output window, operand 0']
    #allocation4 [shape = 's32[2]{0}', space=sflag, size = 0x8, scoped, tag = 'scoped memory for tpu_custom_call.1']
    %14 = vsyncpa [#allocation4], 0
    %s15 = scalar_lea.sflag [#allocation4], 1
    %16 = vsyncpa %s15, 0
    loop: start=0, step=1, limit=6
    $region2: #{tpu_custom_call.1} parent=1 // loop_pre_header
      _
    $region3: #{tpu_custom_call.1} parent=1 // loop_header
      %s18 = sphi 0, %s22
      %p19 = scmp.ge.s32.totalorder %s18, 6
      %s28 = sphi 0, %s30
      %s31 = sphi 0, %s28
      %s32 = sphi 0, %s31
      %s48 = sphi 0, %s32
      %s52 = sphi 0, %s52
      %s54 = sphi 0, %s52
      %s55 = sphi 0, %s54
      %s69 = sphi 0, %s55
      %s73 = sphi 0, %s73
      %s75 = sphi 0, %s73
      %s76 = sphi 0, %s75
      %s90 = sphi 0, %s76
      %s94 = sphi 0, %s94
      %s96 = sphi 0, %s94
      %s97 = sphi 0, %s96
      %s111 = sphi 0, %s97
      %s115 = sphi 0, %s115
      %s117 = sphi 0, %s115
      %s118 = sphi 0, %s117
      %s132 = sphi 0, %s118
      %s136 = sphi 0, %s136
      %s138 = sphi 0, %s136
      %s139 = sphi 0, %s138
      %s153 = sphi 0, %s139
      %s157 = sphi 0, %s157
      %s159 = sphi 0, %s157
      %s160 = sphi 0, %s159
      %s174 = sphi 0, %s160
      %s180 = sphi 0, %s182
      %s183 = sphi 0, %s180
      %s184 = sphi 0, %s183
      %s200 = sphi 0, %s184
    $region4: #{tpu_custom_call.1} parent=1 // loop_header_branch
      %21 = sbr.rel (%p19) target = $region8
    $region5: #{tpu_custom_call.1} parent=1 // loop_body
      %s23 = ssub.s32 %s18, 1
      %s24 = ssub.s32 %s18, 2
      %s25 = sadd.s32 %s18, 1
      %s26 = ssub.s32 %s18, %s25
      %p27 = scmp.eq.s32.totalorder %s26, 0
      %s29 = sadd.s32 %s28, 1
      %s30 = scalar_select %p27, %s28, %s29
      %p33 = pneg %p27
      %p34 = scmp.eq.s32.totalorder %s18, 3
      %p35 = por %p33, %p34
      %p36 = scmp.ne.s32.totalorder %s28, %s31
      %p37 = scmp.eq.s32.totalorder %s18, 0
      %p38 = por %p36, %p37
      %p39 = scmp.ne.s32.totalorder %s28, %s31
      %p40 = scmp.eq.s32.totalorder %s23, 3
      %p41 = por %p39, %p40
      %p42 = scmp.ne.s32.totalorder %s31, %s32
      %p43 = scmp.eq.s32.totalorder %s23, 0
      %p44 = por %p42, %p43
      %p45 = scmp.ne.s32.totalorder %s31, %s32
      %p46 = scmp.eq.s32.totalorder %s24, 3
      %p47 = por %p45, %p46
      %p49 = scmp.ne.s32.totalorder %s32, %s48
      %p50 = scmp.eq.s32.totalorder %s24, 0
      %p51 = por %p49, %p50
      %s53 = sadd.s32 %s52, 1
      %p56 = scmp.eq.s32.totalorder %s18, 3
      %p57 = scmp.ne.s32.totalorder %s52, %s54
      %p58 = scmp.eq.s32.totalorder %s18, 0
      %p59 = por %p57, %p58
      %p60 = scmp.ne.s32.totalorder %s52, %s54
      %p61 = scmp.eq.s32.totalorder %s23, 3
      %p62 = por %p60, %p61
      %p63 = scmp.ne.s32.totalorder %s54, %s55
      %p64 = scmp.eq.s32.totalorder %s23, 0
      %p65 = por %p63, %p64
      %p66 = scmp.ne.s32.totalorder %s54, %s55
      %p67 = scmp.eq.s32.totalorder %s24, 3
      %p68 = por %p66, %p67
      %p70 = scmp.ne.s32.totalorder %s55, %s69
      %p71 = scmp.eq.s32.totalorder %s24, 0
      %p72 = por %p70, %p71
      %s74 = sadd.s32 %s73, 1
      %p77 = scmp.eq.s32.totalorder %s18, 3
      %p78 = scmp.ne.s32.totalorder %s73, %s75
      %p79 = scmp.eq.s32.totalorder %s18, 0
      %p80 = por %p78, %p79
      %p81 = scmp.ne.s32.totalorder %s73, %s75
      %p82 = scmp.eq.s32.totalorder %s23, 3
      %p83 = por %p81, %p82
      %p84 = scmp.ne.s32.totalorder %s75, %s76
      %p85 = scmp.eq.s32.totalorder %s23, 0
      %p86 = por %p84, %p85
      %p87 = scmp.ne.s32.totalorder %s75, %s76
      %p88 = scmp.eq.s32.totalorder %s24, 3
      %p89 = por %p87, %p88
      %p91 = scmp.ne.s32.totalorder %s76, %s90
      %p92 = scmp.eq.s32.totalorder %s24, 0
      %p93 = por %p91, %p92
      %s95 = sadd.s32 %s94, 1
      %p98 = scmp.eq.s32.totalorder %s18, 3
      %p99 = scmp.ne.s32.totalorder %s94, %s96
      %p100 = scmp.eq.s32.totalorder %s18, 0
      %p101 = por %p99, %p100
      %p102 = scmp.ne.s32.totalorder %s94, %s96
      %p103 = scmp.eq.s32.totalorder %s23, 3
      %p104 = por %p102, %p103
      %p105 = scmp.ne.s32.totalorder %s96, %s97
      %p106 = scmp.eq.s32.totalorder %s23, 0
      %p107 = por %p105, %p106
      %p108 = scmp.ne.s32.totalorder %s96, %s97
      %p109 = scmp.eq.s32.totalorder %s24, 3
      %p110 = por %p108, %p109
      %p112 = scmp.ne.s32.totalorder %s97, %s111
      %p113 = scmp.eq.s32.totalorder %s24, 0
      %p114 = por %p112, %p113
      %s116 = sadd.s32 %s115, 1
      %p119 = scmp.eq.s32.totalorder %s18, 3
      %p120 = scmp.ne.s32.totalorder %s115, %s117
      %p121 = scmp.eq.s32.totalorder %s18, 0
      %p122 = por %p120, %p121
      %p123 = scmp.ne.s32.totalorder %s115, %s117
      %p124 = scmp.eq.s32.totalorder %s23, 3
      %p125 = por %p123, %p124
      %p126 = scmp.ne.s32.totalorder %s117, %s118
      %p127 = scmp.eq.s32.totalorder %s23, 0
      %p128 = por %p126, %p127
      %p129 = scmp.ne.s32.totalorder %s117, %s118
      %p130 = scmp.eq.s32.totalorder %s24, 3
      %p131 = por %p129, %p130
      %p133 = scmp.ne.s32.totalorder %s118, %s132
      %p134 = scmp.eq.s32.totalorder %s24, 0
      %p135 = por %p133, %p134
      %s137 = sadd.s32 %s136, 1
      %p140 = scmp.eq.s32.totalorder %s18, 3
      %p141 = scmp.ne.s32.totalorder %s136, %s138
      %p142 = scmp.eq.s32.totalorder %s18, 0
      %p143 = por %p141, %p142
      %p144 = scmp.ne.s32.totalorder %s136, %s138
      %p145 = scmp.eq.s32.totalorder %s23, 3
      %p146 = por %p144, %p145
      %p147 = scmp.ne.s32.totalorder %s138, %s139
      %p148 = scmp.eq.s32.totalorder %s23, 0
      %p149 = por %p147, %p148
      %p150 = scmp.ne.s32.totalorder %s138, %s139
      %p151 = scmp.eq.s32.totalorder %s24, 3
      %p152 = por %p150, %p151
      %p154 = scmp.ne.s32.totalorder %s139, %s153
      %p155 = scmp.eq.s32.totalorder %s24, 0
      %p156 = por %p154, %p155
      %s158 = sadd.s32 %s157, 1
      %p161 = scmp.eq.s32.totalorder %s18, 3
      %p162 = scmp.ne.s32.totalorder %s157, %s159
      %p163 = scmp.eq.s32.totalorder %s18, 0
      %p164 = por %p162, %p163
      %p165 = scmp.ne.s32.totalorder %s157, %s159
      %p166 = scmp.eq.s32.totalorder %s23, 3
      %p167 = por %p165, %p166
      %p168 = scmp.ne.s32.totalorder %s159, %s160
      %p169 = scmp.eq.s32.totalorder %s23, 0
      %p170 = por %p168, %p169
      %p171 = scmp.ne.s32.totalorder %s159, %s160
      %p172 = scmp.eq.s32.totalorder %s24, 3
      %p173 = por %p171, %p172
      %p175 = scmp.ne.s32.totalorder %s160, %s174
      %p176 = scmp.eq.s32.totalorder %s24, 0
      %p177 = por %p175, %p176
      %s178 = ssub.s32 %s18, %s25
      %p179 = scmp.eq.s32.totalorder %s178, 0
      %s181 = sadd.s32 %s180, 1
      %s182 = scalar_select %p179, %s180, %s181
      %p185 = pneg %p179
      %p186 = scmp.eq.s32.totalorder %s18, 3
      %p187 = por %p185, %p186
      %p188 = scmp.ne.s32.totalorder %s180, %s183
      %p189 = scmp.eq.s32.totalorder %s18, 0
      %p190 = por %p188, %p189
      %p191 = scmp.ne.s32.totalorder %s180, %s183
      %p192 = scmp.eq.s32.totalorder %s23, 3
      %p193 = por %p191, %p192
      %p194 = scmp.ne.s32.totalorder %s183, %s184
      %p195 = scmp.eq.s32.totalorder %s23, 0
      %p196 = por %p194, %p195
      %p197 = scmp.ne.s32.totalorder %s183, %s184
      %p198 = scmp.eq.s32.totalorder %s24, 3
      %p199 = por %p197, %p198
      %p201 = scmp.ne.s32.totalorder %s184, %s200
      %p202 = scmp.eq.s32.totalorder %s24, 0
      %p203 = por %p201, %p202
      %p204 = scmp.le.s32.totalorder 1, %s18
      %p205 = scmp.lt.s32.totalorder %s18, 5
      %p206 = pnand %p204, %p205
      %p207 = pneg %p206
      // Predicated region
      $region9: #{tpu_custom_call.1} parent=5 // pred_check
        _
      $region10: #{tpu_custom_call.1} parent=5 // pred_check_branch
        %209 = sbr.rel (%p206) target = $region12
      $region11: #{tpu_custom_call.1} parent=5 // pred_region
        %s210 = ssub.s32 %s18, 1
        // Predicated region
        $region13: #{tpu_custom_call.1} parent=11 // pred_check
          %p211 = pneg %p65
        $region14: #{tpu_custom_call.1} parent=11 // pred_check_branch
          %213 = sbr.rel (%p211) target = $region16
        $region15: #{tpu_custom_call.1} parent=11 // pred_region
          _
        $region16: #{tpu_custom_call.1} parent=11 // pred_fallthru
          _
        // Predicated region
        $region17: #{tpu_custom_call.1} parent=11 // pred_check
          %p214 = pneg %p86
        $region18: #{tpu_custom_call.1} parent=11 // pred_check_branch
          %216 = sbr.rel (%p214) target = $region20
        $region19: #{tpu_custom_call.1} parent=11 // pred_region
          _
        $region20: #{tpu_custom_call.1} parent=11 // pred_fallthru
          _
        // Predicated region
        $region21: #{tpu_custom_call.1} parent=11 // pred_check
          %p217 = pneg %p107
        $region22: #{tpu_custom_call.1} parent=11 // pred_check_branch
          %219 = sbr.rel (%p217) target = $region24
        $region23: #{tpu_custom_call.1} parent=11 // pred_region
          _
        $region24: #{tpu_custom_call.1} parent=11 // pred_fallthru
          _
        // Predicated region
        $region25: #{tpu_custom_call.1} parent=11 // pred_check
          %p220 = pneg %p128
        $region26: #{tpu_custom_call.1} parent=11 // pred_check_branch
          %222 = sbr.rel (%p220) target = $region28
        $region27: #{tpu_custom_call.1} parent=11 // pred_region
          _
        $region28: #{tpu_custom_call.1} parent=11 // pred_fallthru
          _
        // Predicated region
        $region29: #{tpu_custom_call.1} parent=11 // pred_check
          %p223 = pneg %p149
        $region30: #{tpu_custom_call.1} parent=11 // pred_check_branch
          %225 = sbr.rel (%p223) target = $region32
        $region31: #{tpu_custom_call.1} parent=11 // pred_region
          _
        $region32: #{tpu_custom_call.1} parent=11 // pred_fallthru
          _
        // Predicated region
        $region33: #{tpu_custom_call.1} parent=11 // pred_check
          %p226 = pneg %p170
        $region34: #{tpu_custom_call.1} parent=11 // pred_check_branch
          %228 = sbr.rel (%p226) target = $region36
        $region35: #{tpu_custom_call.1} parent=11 // pred_region
          _
        $region36: #{tpu_custom_call.1} parent=11 // pred_fallthru
          _
      $region12: #{tpu_custom_call.1} parent=5 // pred_fallthru
        _
      %p229 = scmp.lt.s32.totalorder %s18, 4
      // Predicated region
      $region37: #{tpu_custom_call.1} parent=5 // pred_check
        %p230 = pneg %p229
      $region38: #{tpu_custom_call.1} parent=5 // pred_check_branch
        %232 = sbr.rel (%p230) target = $region40
      $region39: #{tpu_custom_call.1} parent=5 // pred_region
        // Predicated region
        $region41: #{tpu_custom_call.1} parent=39 // pred_check
          %p233 = pneg %p38
        $region42: #{tpu_custom_call.1} parent=39 // pred_check_branch
          %235 = sbr.rel (%p233) target = $region44
        $region43: #{tpu_custom_call.1} parent=39 // pred_region
          %s236 = smul.u32 32, %s18
          %s237 = ssub.s32 125, %s236
          %p238 = scmp.lt.s32.totalorder %s237, 32
          %s239 = scalar_select %p238, %s237, 32
          %s240 = smul.u32 8, %s239
          %p241 = scmp.lt.s32.totalorder %s236, 124
          %s242 = scalar_select %p241, %s236, 124
          %s243 = smul.addr %s242, 8
          %s244 = scalar_lea.vmem %s0, %s243
          %s245 = smul.u32 32, %s18
          %s246 = ssub.s32 125, %s245
          %p247 = scmp.lt.s32.totalorder %s246, 32
          %s248 = scalar_select %p247, %s246, 32
          %s249 = smul.u32 8, %s248
        $region44: #{tpu_custom_call.1} parent=39 // pred_fallthru
          _
      $region40: #{tpu_custom_call.1} parent=5 // pred_fallthru
        _
      %p250 = scmp.le.s32.totalorder 1, %s18
      %p251 = scmp.lt.s32.totalorder %s18, 5
      %p252 = pnand %p250, %p251
      %p253 = pneg %p252
      // Predicated region
      $region45: #{tpu_custom_call.1} parent=5 // pred_check
        _
      $region46: #{tpu_custom_call.1} parent=5 // pred_check_branch
        %255 = sbr.rel (%p252) target = $region48
      $region47: #{tpu_custom_call.1} parent=5 // pred_region
        %s256 = ssub.s32 %s18, 1
        %s257 = smul.u32 32, %s23
        %s258 = ssub.s32 125, %s257
        %p259 = scmp.lt.s32.totalorder %s258, 32
        %s260 = scalar_select %p259, %s258, 32
        %s261 = smul.u32 8, %s260
        %p262 = scmp.lt.s32.totalorder %s257, 124
        %s263 = scalar_select %p262, %s257, 124
        %s264 = smul.addr %s263, 8
        %s265 = scalar_lea.vmem %s0, %s264
        %p266 = pneg %p44
        %p267 = pneg %p41
        %p268 = pneg %p65
        %p269 = pneg %p62
        %p270 = pneg %p86
        %p271 = pneg %p83
        %p272 = pneg %p107
        %p273 = pneg %p104
        %p274 = pneg %p128
        %p275 = pneg %p125
        %p276 = pneg %p149
        %p277 = pneg %p146
        %p278 = pneg %p170
        %p279 = pneg %p167
        %p280 = pneg %p196
        %p281 = pneg %p193
        %s282 = sand.u32 %s183, 1
        %s283 = scalar_lea.sflag [#allocation4], %s282
        %s284 = sand.u32 %s183, 1
        %s285 = smul.addr %s284, 2
        %s286 = scalar_lea.vmem [#allocation3], %s285
        %s287 = smul.u32 32, %s23
        %s288 = ssub.s32 125, %s287
        %p289 = scmp.lt.s32.totalorder %s288, 32
        %s290 = scalar_select %p289, %s288, 32
        %s291 = smul.u32 8, %s290
        %p292 = scmp.lt.s32.totalorder %s287, 124
        %s293 = scalar_select %p292, %s287, 124
        %s294 = smul.addr %s293, 8
        %s295 = scalar_lea.vmem %s0, %s294
        %s296 = smul.u32 32, %s23
        %s297 = ssub.s32 125, %s296
        %p298 = scmp.lt.s32.totalorder %s297, 32
        %s299 = scalar_select %p298, %s297, 32
        %s300 = smul.u32 8, %s299
        %s301 = smul.u32 2, %s23
        %v302 = vld [vmem:[%s295] sm:$0xff]
        %v303 = vld [vmem:[%s295 + $0x8] sm:$0xff]
        %v304 = vld [vmem:[%s295 + $0x10] sm:$0xff]
        %v305 = vld [vmem:[%s295 + $0x18] sm:$0xff]
        %v306 = vld [vmem:[%s295 + $0x20] sm:$0xff]
        %v307 = vld [vmem:[%s295 + $0x28] sm:$0xff]
        %v308 = vld [vmem:[%s295 + $0x30] sm:$0xff]
        %v309 = vld [vmem:[%s295 + $0x38] sm:$0xff]
        %v310 = vld [vmem:[%s295 + $0x40] sm:$0xff]
        %v311 = vld [vmem:[%s295 + $0x48] sm:$0xff]
        %v312 = vld [vmem:[%s295 + $0x50] sm:$0xff]
        %v313 = vld [vmem:[%s295 + $0x58] sm:$0xff]
        %v314 = vld [vmem:[%s295 + $0x60] sm:$0xff]
        %v315 = vld [vmem:[%s295 + $0x68] sm:$0xff]
        %v316 = vld [vmem:[%s295 + $0x70] sm:$0xff]
        %v317 = vld [vmem:[%s295 + $0x78] sm:$0xff]
        %v318 = vld [vmem:[%s295 + $0x80] sm:$0xff]
        %v319 = vld [vmem:[%s295 + $0x88] sm:$0xff]
        %v320 = vld [vmem:[%s295 + $0x90] sm:$0xff]
        %v321 = vld [vmem:[%s295 + $0x98] sm:$0xff]
        %v322 = vld [vmem:[%s295 + $0xa0] sm:$0xff]
        %v323 = vld [vmem:[%s295 + $0xa8] sm:$0xff]
        %v324 = vld [vmem:[%s295 + $0xb0] sm:$0xff]
        %v325 = vld [vmem:[%s295 + $0xb8] sm:$0xff]
        %v326 = vld [vmem:[%s295 + $0xc0] sm:$0xff]
        %v327 = vld [vmem:[%s295 + $0xc8] sm:$0xff]
        %v328 = vld [vmem:[%s295 + $0xd0] sm:$0xff]
        %v329 = vld [vmem:[%s295 + $0xd8] sm:$0xff]
        %v330 = vld [vmem:[%s295 + $0xe0] sm:$0xff]
        %v331 = vld [vmem:[%s295 + $0xe8] sm:$0xff]
        %v332 = vld [vmem:[%s295 + $0xf0] sm:$0xff]
        %v333 = vld [vmem:[%s295 + $0xf8] sm:$0xff]
        %v334 = vpack.c.bf16 %v303, %v302
        %v335 = vpack.c.bf16 %v305, %v304
        %v336 = vpack.c.bf16 %v307, %v306
        %v337 = vpack.c.bf16 %v309, %v308
        %v338 = vpack.c.bf16 %v311, %v310
        %v339 = vpack.c.bf16 %v313, %v312
        %v340 = vpack.c.bf16 %v315, %v314
        %v341 = vpack.c.bf16 %v317, %v316
        %v342 = vpack.c.bf16 %v319, %v318
        %v343 = vpack.c.bf16 %v321, %v320
        %v344 = vpack.c.bf16 %v323, %v322
        %v345 = vpack.c.bf16 %v325, %v324
        %v346 = vpack.c.bf16 %v327, %v326
        %v347 = vpack.c.bf16 %v329, %v328
        %v348 = vpack.c.bf16 %v331, %v330
        %v349 = vpack.c.bf16 %v333, %v332
        %v350 = vld [vmem:[%s1] sm:$0xf]
        %v351 = vld [vmem:[%s1 + $0x4] sm:$0xf]
        %v352 = vld [vmem:[%s1 + $0x8] sm:$0xf]
        %v353 = vld [vmem:[%s1 + $0xc] sm:$0xf]
        %v354 = vld [vmem:[%s1 + $0x10] sm:$0xf]
        %v355 = vld [vmem:[%s1 + $0x14] sm:$0xf]
        %v356 = vld [vmem:[%s1 + $0x18] sm:$0xf]
        %v357 = vld [vmem:[%s1 + $0x1c] sm:$0xf]
        %v358 = vld [vmem:[%s1 + $0x20] sm:$0xf]
        %v359 = vld [vmem:[%s1 + $0x24] sm:$0xf]
        %v360 = vld [vmem:[%s1 + $0x28] sm:$0xf]
        %v361 = vld [vmem:[%s1 + $0x2c] sm:$0xf]
        %v362 = vld [vmem:[%s1 + $0x30] sm:$0xf]
        %v363 = vld [vmem:[%s1 + $0x34] sm:$0xf]
        %v364 = vld [vmem:[%s1 + $0x38] sm:$0xf]
        %v365 = vld [vmem:[%s1 + $0x3c] sm:$0xf]
        %v366 = vld [vmem:[%s2] sm:$0xff]
        %v367 = vld [vmem:[%s2 + $0x8] sm:$0xff]
        %v368 = vld [vmem:[%s2 + $0x10] sm:$0xff]
        %v369 = vld [vmem:[%s2 + $0x18] sm:$0xff]
        %v370 = vld [vmem:[%s2 + $0x20] sm:$0xff]
        %v371 = vld [vmem:[%s2 + $0x28] sm:$0xff]
        %v372 = vld [vmem:[%s2 + $0x30] sm:$0xff]
        %v373 = vld [vmem:[%s2 + $0x38] sm:$0xff]
        %v374 = vld [vmem:[%s2 + $0x40] sm:$0xff]
        %v375 = vld [vmem:[%s2 + $0x48] sm:$0xff]
        %v376 = vld [vmem:[%s2 + $0x50] sm:$0xff]
        %v377 = vld [vmem:[%s2 + $0x58] sm:$0xff]
        %v378 = vld [vmem:[%s2 + $0x60] sm:$0xff]
        %v379 = vld [vmem:[%s2 + $0x68] sm:$0xff]
        %v380 = vld [vmem:[%s2 + $0x70] sm:$0xff]
        %v381 = vld [vmem:[%s2 + $0x78] sm:$0xff]
        %383 = vset.pattern.permute.xlu0 0
        %384 = vperm.xlu0 %383, %v366
        %v385 = vpop.permute.xlu0 %384
        %388 = vset.pattern.permute.xlu0 0
        %389 = vperm.xlu0 %388, %v367
        %v390 = vpop.permute.xlu0 %389
        %393 = vset.pattern.permute.xlu0 0
        %394 = vperm.xlu0 %393, %v368
        %v395 = vpop.permute.xlu0 %394
        %398 = vset.pattern.permute.xlu0 0
        %399 = vperm.xlu0 %398, %v369
        %v400 = vpop.permute.xlu0 %399
        %403 = vset.pattern.permute.xlu0 0
        %404 = vperm.xlu0 %403, %v370
        %v405 = vpop.permute.xlu0 %404
        %408 = vset.pattern.permute.xlu0 0
        %409 = vperm.xlu0 %408, %v371
        %v410 = vpop.permute.xlu0 %409
        %413 = vset.pattern.permute.xlu0 0
        %414 = vperm.xlu0 %413, %v372
        %v415 = vpop.permute.xlu0 %414
        %418 = vset.pattern.permute.xlu0 0
        %419 = vperm.xlu0 %418, %v373
        %v420 = vpop.permute.xlu0 %419
        %423 = vset.pattern.permute.xlu0 0
        %424 = vperm.xlu0 %423, %v374
        %v425 = vpop.permute.xlu0 %424
        %428 = vset.pattern.permute.xlu0 0
        %429 = vperm.xlu0 %428, %v375
        %v430 = vpop.permute.xlu0 %429
        %433 = vset.pattern.permute.xlu0 0
        %434 = vperm.xlu0 %433, %v376
        %v435 = vpop.permute.xlu0 %434
        %438 = vset.pattern.permute.xlu0 0
        %439 = vperm.xlu0 %438, %v377
        %v440 = vpop.permute.xlu0 %439
        %443 = vset.pattern.permute.xlu0 0
        %444 = vperm.xlu0 %443, %v378
        %v445 = vpop.permute.xlu0 %444
        %448 = vset.pattern.permute.xlu0 0
        %449 = vperm.xlu0 %448, %v379
        %v450 = vpop.permute.xlu0 %449
        %453 = vset.pattern.permute.xlu0 0
        %454 = vperm.xlu0 %453, %v380
        %v455 = vpop.permute.xlu0 %454
        %458 = vset.pattern.permute.xlu0 0
        %459 = vperm.xlu0 %458, %v381
        %v460 = vpop.permute.xlu0 %459
        %v478 = vunpack.c.l.b16 %v350
        %v479 = vunpack.c.l.b16 %v351
        %v480 = vunpack.c.l.b16 %v352
        %v481 = vunpack.c.l.b16 %v353
        %v482 = vunpack.c.l.b16 %v354
        %v483 = vunpack.c.l.b16 %v355
        %v484 = vunpack.c.l.b16 %v356
        %v485 = vunpack.c.l.b16 %v357
        %v486 = vunpack.c.l.b16 %v358
        %v487 = vunpack.c.l.b16 %v359
        %v488 = vunpack.c.l.b16 %v360
        %v489 = vunpack.c.l.b16 %v361
        %v490 = vunpack.c.l.b16 %v362
        %v491 = vunpack.c.l.b16 %v363
        %v492 = vunpack.c.l.b16 %v364
        %v493 = vunpack.c.l.b16 %v365
        %v494 = vpack.c.b16 %v479, %v478
        %v495 = vpack.c.b16 %v481, %v480
        %v496 = vpack.c.b16 %v483, %v482
        %v497 = vpack.c.b16 %v485, %v484
        %v498 = vpack.c.b16 %v487, %v486
        %v499 = vpack.c.b16 %v489, %v488
        %v500 = vpack.c.b16 %v491, %v490
        %v501 = vpack.c.b16 %v493, %v492
        %vm502 = vcmask 261120
        %v504 = vsel %vm502, %v494, 0
        %v507 = vsel %vm502, %v495, 0
        %v510 = vsel %vm502, %v496, 0
        %v513 = vsel %vm502, %v497, 0
        %v516 = vsel %vm502, %v498, 0
        %v519 = vsel %vm502, %v499, 0
        %v522 = vsel %vm502, %v500, 0
        %v525 = vsel %vm502, %v501, 0
        %v528 = vsel %vm502, %v334, 0
        %v531 = vsel %vm502, %v335, 0
        %v534 = vsel %vm502, %v336, 0
        %v537 = vsel %vm502, %v337, 0
        %v540 = vsel %vm502, %v338, 0
        %v543 = vsel %vm502, %v339, 0
        %v546 = vsel %vm502, %v340, 0
        %v549 = vsel %vm502, %v341, 0
        %v552 = vsel %vm502, %v342, 0
        %v555 = vsel %vm502, %v343, 0
        %v558 = vsel %vm502, %v344, 0
        %v561 = vsel %vm502, %v345, 0
        %v564 = vsel %vm502, %v346, 0
        %v567 = vsel %vm502, %v347, 0
        %v570 = vsel %vm502, %v348, 0
        %v573 = vsel %vm502, %v349, 0
        %575 = vmatpush.bf16.xpose.msra.mxu0 %v549
        %576 = vmatpush.bf16.xpose.msra.mxu0 %v546
        %577 = vmatpush.bf16.xpose.msra.mxu0 %v543
        %578 = vmatpush.bf16.xpose.msra.mxu0 %v540
        %579 = vmatpush.bf16.xpose.msra.mxu0 %v537
        %580 = vmatpush.bf16.xpose.msra.mxu0 %v534
        %581 = vmatpush.bf16.xpose.msra.mxu0 %v531
        %582 = vmatpush.bf16.xpose.msra.mxu0 %v528
        %583 = vmatmul.bf16.gmra.mxu0 %v504
        %v584 = vpop.f32.mrf.mxu0
        %v585 = vadd.f32 %v385, %v584
        %v586 = vpop.f32.mrf.mxu0
        %v587 = vadd.f32 %v390, %v586
        %588 = vmatmul.bf16.gmra.mxu0 %v507
        %v589 = vpop.f32.mrf.mxu0
        %v590 = vadd.f32 %v395, %v589
        %v591 = vpop.f32.mrf.mxu0
        %v592 = vadd.f32 %v400, %v591
        %593 = vmatmul.bf16.gmra.mxu0 %v510
        %v594 = vpop.f32.mrf.mxu0
        %v595 = vadd.f32 %v405, %v594
        %v596 = vpop.f32.mrf.mxu0
        %v597 = vadd.f32 %v410, %v596
        %598 = vmatmul.bf16.gmra.mxu0 %v513
        %v599 = vpop.f32.mrf.mxu0
        %v600 = vadd.f32 %v415, %v599
        %v601 = vpop.f32.mrf.mxu0
        %v602 = vadd.f32 %v420, %v601
        %603 = vmatmul.bf16.gmra.mxu0 %v516
        %v604 = vpop.f32.mrf.mxu0
        %v605 = vadd.f32 %v425, %v604
        %v606 = vpop.f32.mrf.mxu0
        %v607 = vadd.f32 %v430, %v606
        %608 = vmatmul.bf16.gmra.mxu0 %v519
        %v609 = vpop.f32.mrf.mxu0
        %v610 = vadd.f32 %v435, %v609
        %v611 = vpop.f32.mrf.mxu0
        %v612 = vadd.f32 %v440, %v611
        %613 = vmatmul.bf16.gmra.mxu0 %v522
        %v614 = vpop.f32.mrf.mxu0
        %v615 = vadd.f32 %v445, %v614
        %v616 = vpop.f32.mrf.mxu0
        %v617 = vadd.f32 %v450, %v616
        %618 = vmatmul.bf16.gmra.mxu0 %v525
        %v619 = vpop.f32.mrf.mxu0
        %v620 = vadd.f32 %v455, %v619
        %v621 = vpop.f32.mrf.mxu0
        %v622 = vadd.f32 %v460, %v621
        %623 = vdwg.mxu0
        %624 = vmatpush.bf16.xpose.msra.mxu0 %v573
        %625 = vmatpush.bf16.xpose.msra.mxu0 %v570
        %626 = vmatpush.bf16.xpose.msra.mxu0 %v567
        %627 = vmatpush.bf16.xpose.msra.mxu0 %v564
        %628 = vmatpush.bf16.xpose.msra.mxu0 %v561
        %629 = vmatpush.bf16.xpose.msra.mxu0 %v558
        %630 = vmatpush.bf16.xpose.msra.mxu0 %v555
        %631 = vmatpush.bf16.xpose.msra.mxu0 %v552
        %632 = vmatmul.bf16.gmra.mxu0 %v504
        %v633 = vpop.f32.mrf.mxu0
        %v634 = vadd.f32 %v385, %v633
        %v635 = vpop.f32.mrf.mxu0
        %v636 = vadd.f32 %v390, %v635
        %637 = vmatmul.bf16.gmra.mxu0 %v507
        %v638 = vpop.f32.mrf.mxu0
        %v639 = vadd.f32 %v395, %v638
        %v640 = vpop.f32.mrf.mxu0
        %v641 = vadd.f32 %v400, %v640
        %642 = vmatmul.bf16.gmra.mxu0 %v510
        %v643 = vpop.f32.mrf.mxu0
        %v644 = vadd.f32 %v405, %v643
        %v645 = vpop.f32.mrf.mxu0
        %v646 = vadd.f32 %v410, %v645
        %647 = vmatmul.bf16.gmra.mxu0 %v513
        %v648 = vpop.f32.mrf.mxu0
        %v649 = vadd.f32 %v415, %v648
        %v650 = vpop.f32.mrf.mxu0
        %v651 = vadd.f32 %v420, %v650
        %652 = vmatmul.bf16.gmra.mxu0 %v516
        %v653 = vpop.f32.mrf.mxu0
        %v654 = vadd.f32 %v425, %v653
        %v655 = vpop.f32.mrf.mxu0
        %v656 = vadd.f32 %v430, %v655
        %657 = vmatmul.bf16.gmra.mxu0 %v519
        %v658 = vpop.f32.mrf.mxu0
        %v659 = vadd.f32 %v435, %v658
        %v660 = vpop.f32.mrf.mxu0
        %v661 = vadd.f32 %v440, %v660
        %662 = vmatmul.bf16.gmra.mxu0 %v522
        %v663 = vpop.f32.mrf.mxu0
        %v664 = vadd.f32 %v445, %v663
        %v665 = vpop.f32.mrf.mxu0
        %v666 = vadd.f32 %v450, %v665
        %667 = vmatmul.bf16.gmra.mxu0 %v525
        %v668 = vpop.f32.mrf.mxu0
        %v669 = vadd.f32 %v455, %v668
        %v670 = vpop.f32.mrf.mxu0
        %v671 = vadd.f32 %v460, %v670
        %672 = vdwg.mxu0
        %v673 = vmax.f32 %v585, 0.0
        %v674 = vmax.f32 %v634, 0.0
        %v675 = vmax.f32 %v587, 0.0
        %v676 = vmax.f32 %v636, 0.0
        %v677 = vmax.f32 %v590, 0.0
        %v678 = vmax.f32 %v639, 0.0
        %v679 = vmax.f32 %v592, 0.0
        %v680 = vmax.f32 %v641, 0.0
        %v681 = vmax.f32 %v595, 0.0
        %v682 = vmax.f32 %v644, 0.0
        %v683 = vmax.f32 %v597, 0.0
        %v684 = vmax.f32 %v646, 0.0
        %v685 = vmax.f32 %v600, 0.0
        %v686 = vmax.f32 %v649, 0.0
        %v687 = vmax.f32 %v602, 0.0
        %v688 = vmax.f32 %v651, 0.0
        %v689 = vmax.f32 %v605, 0.0
        %v690 = vmax.f32 %v654, 0.0
        %v691 = vmax.f32 %v607, 0.0
        %v692 = vmax.f32 %v656, 0.0
        %v693 = vmax.f32 %v610, 0.0
        %v694 = vmax.f32 %v659, 0.0
        %v695 = vmax.f32 %v612, 0.0
        %v696 = vmax.f32 %v661, 0.0
        %v697 = vmax.f32 %v615, 0.0
        %v698 = vmax.f32 %v664, 0.0
        %v699 = vmax.f32 %v617, 0.0
        %v700 = vmax.f32 %v666, 0.0
        %v701 = vmax.f32 %v620, 0.0
        %v702 = vmax.f32 %v669, 0.0
        %v703 = vmax.f32 %v622, 0.0
        %v704 = vmax.f32 %v671, 0.0
        %v705 = vld [vmem:[%s3] sm:$0xf]
        %v706 = vld [vmem:[%s3 + $0x4] sm:$0xf]
        %v707 = vld [vmem:[%s3 + $0x8] sm:$0xf]
        %v708 = vld [vmem:[%s3 + $0xc] sm:$0xf]
        %v709 = vld [vmem:[%s3 + $0x10] sm:$0xf]
        %v710 = vld [vmem:[%s3 + $0x14] sm:$0xf]
        %v711 = vld [vmem:[%s3 + $0x18] sm:$0xf]
        %v712 = vld [vmem:[%s3 + $0x1c] sm:$0xf]
        %v713 = vld [vmem:[%s3 + $0x20] sm:$0xf]
        %v714 = vld [vmem:[%s3 + $0x24] sm:$0xf]
        %v715 = vld [vmem:[%s3 + $0x28] sm:$0xf]
        %v716 = vld [vmem:[%s3 + $0x2c] sm:$0xf]
        %v717 = vld [vmem:[%s3 + $0x30] sm:$0xf]
        %v718 = vld [vmem:[%s3 + $0x34] sm:$0xf]
        %v719 = vld [vmem:[%s3 + $0x38] sm:$0xf]
        %v720 = vld [vmem:[%s3 + $0x3c] sm:$0xf]
        %v721 = vpack.c.bf16 %v675, %v673
        %v722 = vpack.c.bf16 %v676, %v674
        %v723 = vpack.c.bf16 %v679, %v677
        %v724 = vpack.c.bf16 %v680, %v678
        %v725 = vpack.c.bf16 %v683, %v681
        %v726 = vpack.c.bf16 %v684, %v682
        %v727 = vpack.c.bf16 %v687, %v685
        %v728 = vpack.c.bf16 %v688, %v686
        %v729 = vpack.c.bf16 %v691, %v689
        %v730 = vpack.c.bf16 %v692, %v690
        %v731 = vpack.c.bf16 %v695, %v693
        %v732 = vpack.c.bf16 %v696, %v694
        %v733 = vpack.c.bf16 %v699, %v697
        %v734 = vpack.c.bf16 %v700, %v698
        %v735 = vpack.c.bf16 %v703, %v701
        %v736 = vpack.c.bf16 %v704, %v702
        %v737 = vld [vmem:[%s4] sm:$0xff]
        %v738 = vld [vmem:[%s4 + $0x8] sm:$0xff]
        %v739 = vld [vmem:[%s4 + $0x10] sm:$0xff]
        %v740 = vld [vmem:[%s4 + $0x18] sm:$0xff]
        %v741 = vld [vmem:[%s4 + $0x20] sm:$0xff]
        %v742 = vld [vmem:[%s4 + $0x28] sm:$0xff]
        %v743 = vld [vmem:[%s4 + $0x30] sm:$0xff]
        %v744 = vld [vmem:[%s4 + $0x38] sm:$0xff]
        %v745 = vld [vmem:[%s4 + $0x40] sm:$0xff]
        %v746 = vld [vmem:[%s4 + $0x48] sm:$0xff]
        %v747 = vld [vmem:[%s4 + $0x50] sm:$0xff]
        %v748 = vld [vmem:[%s4 + $0x58] sm:$0xff]
        %v749 = vld [vmem:[%s4 + $0x60] sm:$0xff]
        %v750 = vld [vmem:[%s4 + $0x68] sm:$0xff]
        %v751 = vld [vmem:[%s4 + $0x70] sm:$0xff]
        %v752 = vld [vmem:[%s4 + $0x78] sm:$0xff]
        %754 = vset.pattern.permute.xlu0 0
        %755 = vperm.xlu0 %754, %v737
        %v756 = vpop.permute.xlu0 %755
        %759 = vset.pattern.permute.xlu0 0
        %760 = vperm.xlu0 %759, %v738
        %v761 = vpop.permute.xlu0 %760
        %764 = vset.pattern.permute.xlu0 0
        %765 = vperm.xlu0 %764, %v739
        %v766 = vpop.permute.xlu0 %765
        %769 = vset.pattern.permute.xlu0 0
        %770 = vperm.xlu0 %769, %v740
        %v771 = vpop.permute.xlu0 %770
        %774 = vset.pattern.permute.xlu0 0
        %775 = vperm.xlu0 %774, %v741
        %v776 = vpop.permute.xlu0 %775
        %779 = vset.pattern.permute.xlu0 0
        %780 = vperm.xlu0 %779, %v742
        %v781 = vpop.permute.xlu0 %780
        %784 = vset.pattern.permute.xlu0 0
        %785 = vperm.xlu0 %784, %v743
        %v786 = vpop.permute.xlu0 %785
        %789 = vset.pattern.permute.xlu0 0
        %790 = vperm.xlu0 %789, %v744
        %v791 = vpop.permute.xlu0 %790
        %794 = vset.pattern.permute.xlu0 0
        %795 = vperm.xlu0 %794, %v745
        %v796 = vpop.permute.xlu0 %795
        %799 = vset.pattern.permute.xlu0 0
        %800 = vperm.xlu0 %799, %v746
        %v801 = vpop.permute.xlu0 %800
        %804 = vset.pattern.permute.xlu0 0
        %805 = vperm.xlu0 %804, %v747
        %v806 = vpop.permute.xlu0 %805
        %809 = vset.pattern.permute.xlu0 0
        %810 = vperm.xlu0 %809, %v748
        %v811 = vpop.permute.xlu0 %810
        %814 = vset.pattern.permute.xlu0 0
        %815 = vperm.xlu0 %814, %v749
        %v816 = vpop.permute.xlu0 %815
        %819 = vset.pattern.permute.xlu0 0
        %820 = vperm.xlu0 %819, %v750
        %v821 = vpop.permute.xlu0 %820
        %824 = vset.pattern.permute.xlu0 0
        %825 = vperm.xlu0 %824, %v751
        %v826 = vpop.permute.xlu0 %825
        %829 = vset.pattern.permute.xlu0 0
        %830 = vperm.xlu0 %829, %v752
        %v831 = vpop.permute.xlu0 %830
        %v849 = vunpack.c.l.b16 %v705
        %v850 = vunpack.c.l.b16 %v706
        %v851 = vunpack.c.l.b16 %v707
        %v852 = vunpack.c.l.b16 %v708
        %v853 = vunpack.c.l.b16 %v709
        %v854 = vunpack.c.l.b16 %v710
        %v855 = vunpack.c.l.b16 %v711
        %v856 = vunpack.c.l.b16 %v712
        %v857 = vunpack.c.l.b16 %v713
        %v858 = vunpack.c.l.b16 %v714
        %v859 = vunpack.c.l.b16 %v715
        %v860 = vunpack.c.l.b16 %v716
        %v861 = vunpack.c.l.b16 %v717
        %v862 = vunpack.c.l.b16 %v718
        %v863 = vunpack.c.l.b16 %v719
        %v864 = vunpack.c.l.b16 %v720
        %v865 = vpack.c.b16 %v850, %v849
        %v866 = vpack.c.b16 %v852, %v851
        %v867 = vpack.c.b16 %v854, %v853
        %v868 = vpack.c.b16 %v856, %v855
        %v869 = vpack.c.b16 %v858, %v857
        %v870 = vpack.c.b16 %v860, %v859
        %v871 = vpack.c.b16 %v862, %v861
        %v872 = vpack.c.b16 %v864, %v863
        %881 = vmatpush.bf16.msra.mxu0 %v735
        %882 = vmatpush.bf16.msra.mxu0 %v733
        %883 = vmatpush.bf16.msra.mxu0 %v731
        %884 = vmatpush.bf16.msra.mxu0 %v729
        %885 = vmatpush.bf16.msra.mxu0 %v727
        %886 = vmatpush.bf16.msra.mxu0 %v725
        %887 = vmatpush.bf16.msra.mxu0 %v723
        %888 = vmatpush.bf16.msra.mxu0 %v721
        %889 = vmatmul.bf16.gmra.mxu0 %v865
        %v890 = vpop.f32.mrf.mxu0
        %v891 = vadd.f32 %v756, %v890
        %v892 = vpop.f32.mrf.mxu0
        %v893 = vadd.f32 %v761, %v892
        %894 = vmatmul.bf16.gmra.mxu0 %v866
        %v895 = vpop.f32.mrf.mxu0
        %v896 = vadd.f32 %v766, %v895
        %v897 = vpop.f32.mrf.mxu0
        %v898 = vadd.f32 %v771, %v897
        %899 = vmatmul.bf16.gmra.mxu0 %v867
        %v900 = vpop.f32.mrf.mxu0
        %v901 = vadd.f32 %v776, %v900
        %v902 = vpop.f32.mrf.mxu0
        %v903 = vadd.f32 %v781, %v902
        %904 = vmatmul.bf16.gmra.mxu0 %v868
        %v905 = vpop.f32.mrf.mxu0
        %v906 = vadd.f32 %v786, %v905
        %v907 = vpop.f32.mrf.mxu0
        %v908 = vadd.f32 %v791, %v907
        %909 = vmatmul.bf16.gmra.mxu0 %v869
        %v910 = vpop.f32.mrf.mxu0
        %v911 = vadd.f32 %v796, %v910
        %v912 = vpop.f32.mrf.mxu0
        %v913 = vadd.f32 %v801, %v912
        %914 = vmatmul.bf16.gmra.mxu0 %v870
        %v915 = vpop.f32.mrf.mxu0
        %v916 = vadd.f32 %v806, %v915
        %v917 = vpop.f32.mrf.mxu0
        %v918 = vadd.f32 %v811, %v917
        %919 = vmatmul.bf16.gmra.mxu0 %v871
        %v920 = vpop.f32.mrf.mxu0
        %v921 = vadd.f32 %v816, %v920
        %v922 = vpop.f32.mrf.mxu0
        %v923 = vadd.f32 %v821, %v922
        %924 = vmatmul.bf16.gmra.mxu0 %v872
        %v925 = vpop.f32.mrf.mxu0
        %v926 = vadd.f32 %v826, %v925
        %v927 = vpop.f32.mrf.mxu0
        %v928 = vadd.f32 %v831, %v927
        %929 = vdwg.mxu0
        %930 = vmatpush.bf16.msra.mxu0 %v736
        %931 = vmatpush.bf16.msra.mxu0 %v734
        %932 = vmatpush.bf16.msra.mxu0 %v732
        %933 = vmatpush.bf16.msra.mxu0 %v730
        %934 = vmatpush.bf16.msra.mxu0 %v728
        %935 = vmatpush.bf16.msra.mxu0 %v726
        %936 = vmatpush.bf16.msra.mxu0 %v724
        %937 = vmatpush.bf16.msra.mxu0 %v722
        %938 = vmatmul.bf16.gmra.mxu0 %v865
        %v939 = vpop.f32.mrf.mxu0
        %v940 = vadd.f32 %v756, %v939
        %v941 = vpop.f32.mrf.mxu0
        %v942 = vadd.f32 %v761, %v941
        %943 = vmatmul.bf16.gmra.mxu0 %v866
        %v944 = vpop.f32.mrf.mxu0
        %v945 = vadd.f32 %v766, %v944
        %v946 = vpop.f32.mrf.mxu0
        %v947 = vadd.f32 %v771, %v946
        %948 = vmatmul.bf16.gmra.mxu0 %v867
        %v949 = vpop.f32.mrf.mxu0
        %v950 = vadd.f32 %v776, %v949
        %v951 = vpop.f32.mrf.mxu0
        %v952 = vadd.f32 %v781, %v951
        %953 = vmatmul.bf16.gmra.mxu0 %v868
        %v954 = vpop.f32.mrf.mxu0
        %v955 = vadd.f32 %v786, %v954
        %v956 = vpop.f32.mrf.mxu0
        %v957 = vadd.f32 %v791, %v956
        %958 = vmatmul.bf16.gmra.mxu0 %v869
        %v959 = vpop.f32.mrf.mxu0
        %v960 = vadd.f32 %v796, %v959
        %v961 = vpop.f32.mrf.mxu0
        %v962 = vadd.f32 %v801, %v961
        %963 = vmatmul.bf16.gmra.mxu0 %v870
        %v964 = vpop.f32.mrf.mxu0
        %v965 = vadd.f32 %v806, %v964
        %v966 = vpop.f32.mrf.mxu0
        %v967 = vadd.f32 %v811, %v966
        %968 = vmatmul.bf16.gmra.mxu0 %v871
        %v969 = vpop.f32.mrf.mxu0
        %v970 = vadd.f32 %v816, %v969
        %v971 = vpop.f32.mrf.mxu0
        %v972 = vadd.f32 %v821, %v971
        %973 = vmatmul.bf16.gmra.mxu0 %v872
        %v974 = vpop.f32.mrf.mxu0
        %v975 = vadd.f32 %v826, %v974
        %v976 = vpop.f32.mrf.mxu0
        %v977 = vadd.f32 %v831, %v976
        %978 = vdwg.mxu0
        %v979 = vmax.f32 %v891, 0.0
        %v980 = vmax.f32 %v940, 0.0
        %v981 = vmax.f32 %v893, 0.0
        %v982 = vmax.f32 %v942, 0.0
        %v983 = vmax.f32 %v896, 0.0
        %v984 = vmax.f32 %v945, 0.0
        %v985 = vmax.f32 %v898, 0.0
        %v986 = vmax.f32 %v947, 0.0
        %v987 = vmax.f32 %v901, 0.0
        %v988 = vmax.f32 %v950, 0.0
        %v989 = vmax.f32 %v903, 0.0
        %v990 = vmax.f32 %v952, 0.0
        %v991 = vmax.f32 %v906, 0.0
        %v992 = vmax.f32 %v955, 0.0
        %v993 = vmax.f32 %v908, 0.0
        %v994 = vmax.f32 %v957, 0.0
        %v995 = vmax.f32 %v911, 0.0
        %v996 = vmax.f32 %v960, 0.0
        %v997 = vmax.f32 %v913, 0.0
        %v998 = vmax.f32 %v962, 0.0
        %v999 = vmax.f32 %v916, 0.0
        %v1000 = vmax.f32 %v965, 0.0
        %v1001 = vmax.f32 %v918, 0.0
        %v1002 = vmax.f32 %v967, 0.0
        %v1003 = vmax.f32 %v921, 0.0
        %v1004 = vmax.f32 %v970, 0.0
        %v1005 = vmax.f32 %v923, 0.0
        %v1006 = vmax.f32 %v972, 0.0
        %v1007 = vmax.f32 %v926, 0.0
        %v1008 = vmax.f32 %v975, 0.0
        %v1009 = vmax.f32 %v928, 0.0
        %v1010 = vmax.f32 %v977, 0.0
        %v1011 = vld [vmem:[%s5] sm:$0x1]
        %v1012 = vpack.c.bf16 %v981, %v979
        %v1013 = vpack.c.bf16 %v982, %v980
        %v1014 = vpack.c.bf16 %v985, %v983
        %v1015 = vpack.c.bf16 %v986, %v984
        %v1016 = vpack.c.bf16 %v989, %v987
        %v1017 = vpack.c.bf16 %v990, %v988
        %v1018 = vpack.c.bf16 %v993, %v991
        %v1019 = vpack.c.bf16 %v994, %v992
        %v1020 = vpack.c.bf16 %v997, %v995
        %v1021 = vpack.c.bf16 %v998, %v996
        %v1022 = vpack.c.bf16 %v1001, %v999
        %v1023 = vpack.c.bf16 %v1002, %v1000
        %v1024 = vpack.c.bf16 %v1005, %v1003
        %v1025 = vpack.c.bf16 %v1006, %v1004
        %v1026 = vpack.c.bf16 %v1009, %v1007
        %v1027 = vpack.c.bf16 %v1010, %v1008
        %v1028 = vld [vmem:[#allocation2] sm:$0x1]
        %1030 = vset.pattern.permute.xlu0 0
        %1031 = vperm.xlu0 %1030, %v1028
        %v1032 = vpop.permute.xlu0 %1031
        %v1034 = vperm.slane %v1032, 0
        %1035 = vmatpush.bf16.msra.mxu0 %v1026
        %1036 = vmatpush.bf16.msra.mxu0 %v1024
        %1037 = vmatpush.bf16.msra.mxu0 %v1022
        %1038 = vmatpush.bf16.msra.mxu0 %v1020
        %1039 = vmatpush.bf16.msra.mxu0 %v1018
        %1040 = vmatpush.bf16.msra.mxu0 %v1016
        %1041 = vmatpush.bf16.msra.mxu0 %v1014
        %1042 = vmatpush.bf16.msra.mxu0 %v1012
        %1043 = vmatmul.bf16.gmra.mxu0 %v1011
        %v1044 = vpop.f32.mrf.mxu0
        %v1045 = vadd.f32 %v1034, %v1044
        %v1046 = vpop.f32.mrf.mxu0
        %1047 = vdwg.mxu0
        %1048 = vmatpush.bf16.msra.mxu0 %v1027
        %1049 = vmatpush.bf16.msra.mxu0 %v1025
        %1050 = vmatpush.bf16.msra.mxu0 %v1023
        %1051 = vmatpush.bf16.msra.mxu0 %v1021
        %1052 = vmatpush.bf16.msra.mxu0 %v1019
        %1053 = vmatpush.bf16.msra.mxu0 %v1017
        %1054 = vmatpush.bf16.msra.mxu0 %v1015
        %1055 = vmatpush.bf16.msra.mxu0 %v1013
        %1056 = vmatmul.bf16.gmra.mxu0 %v1011
        %v1057 = vpop.f32.mrf.mxu0
        %v1058 = vadd.f32 %v1034, %v1057
        %v1059 = vpop.f32.mrf.mxu0
        %1060 = vdwg.mxu0
        %v1063 = vrot.slane %v1058, 7
        %vm1064 = vcmask 1040384
        %v1065 = vsel %vm1064, %v1045, %v1063
        %v1067 = vlaneseq
        %vm1068 = vcmp.ge.s32.totalorder %v1067, 0
        %vm1069 = vcmp.lt.s32.totalorder %v1067, 256
        %vm1070 = vmand %vm1068, %vm1069
        %1071 = vst.msk [vmem:[%s286] sm:$0x3] %vm1070, %v1065
        %s1072 = sand.u32 %s183, 1
        %s1073 = scalar_lea.sflag [#allocation4], %s1072
        %s1074 = sand.u32 %s183, 1
        %s1075 = smul.addr %s1074, 2
        %s1076 = scalar_lea.vmem [#allocation3], %s1075
        // Predicated region
        $region49: #{tpu_custom_call.1} parent=47 // pred_check
          %p1077 = pneg %p193
        $region50: #{tpu_custom_call.1} parent=47 // pred_check_branch
          %1079 = sbr.rel (%p1077) target = $region52
        $region51: #{tpu_custom_call.1} parent=47 // pred_region
          %s1080 = smul.u32 2, %s23
          %1082 = vsyncadd %s1073, 0
          %s1083 = scalar_lea.hbm %s7, %s1080
          %s1085 = sshll.u32 %s1076, 4
          %s1086 = int_to_ptr.vmem [resolvable:$true] %s1085
          %s1087 = sshll.u32 %s1083, 4
          %s1088 = int_to_ptr.hbm [resolvable:$true] %s1087
          %1090 = dma.vmem_to_hbm [thread:$0]  %s1086, 32, %s1088, %s1073
        $region52: #{tpu_custom_call.1} parent=47 // pred_fallthru
          _
      $region48: #{tpu_custom_call.1} parent=5 // pred_fallthru
        _
      %p1091 = scmp.le.s32.totalorder 2, %s18
      // Predicated region
      $region53: #{tpu_custom_call.1} parent=5 // pred_check
        %p1092 = pneg %p1091
      $region54: #{tpu_custom_call.1} parent=5 // pred_check_branch
        %1094 = sbr.rel (%p1092) target = $region56
      $region55: #{tpu_custom_call.1} parent=5 // pred_region
        %s1095 = ssub.s32 %s18, 2
        // Predicated region
        $region57: #{tpu_custom_call.1} parent=55 // pred_check
          %p1096 = pneg %p199
        $region58: #{tpu_custom_call.1} parent=55 // pred_check_branch
          %1098 = sbr.rel (%p1096) target = $region60
        $region59: #{tpu_custom_call.1} parent=55 // pred_region
          %s1099 = sand.u32 %s184, 1
          %s1100 = scalar_lea.sflag [#allocation4], %s1099
          %s1101 = sand.u32 %s184, 1
          %s1102 = smul.addr %s1101, 2
          %s1103 = scalar_lea.vmem [#allocation3], %s1102
          %1105 = dma.done %s1100, 32
        $region60: #{tpu_custom_call.1} parent=55 // pred_fallthru
          _
      $region56: #{tpu_custom_call.1} parent=5 // pred_fallthru
        _
    $region6: #{tpu_custom_call.1} parent=1 // loop_footer
      %s22 = sadd.s32 1, %s18
    $region7: #{tpu_custom_call.1} parent=1 // loop_footer_branch
      %17 = sbr.rel target = $region3
    $region8: #{tpu_custom_call.1} parent=1 // loop_exit
      _
    %1106 = vsyncpa [#allocation4], 1
    %s1107 = scalar_lea.sflag [#allocation4], 1
    %1108 = vsyncpa %s1107, 1

</llo_original>
